<compile_context>
chip_gen: v5e
topology: v5e:2x2
jax: 0.10.0
libtpu: 0.0.40
codegen_flags: <defaults>
</compile_context>

<pallas_src>
import functools

import jax
import jax.numpy as jnp
import numpy as np
from jax.experimental import pallas as pl
from jax.experimental.pallas import tpu as pltpu


# --------------------------------------------------------------------------
# Path 1: single-step fully fused kernel (small working sets / demo shapes).
# --------------------------------------------------------------------------
def _dino_loss_fused_kernel(temp_ref, student_ref, teacher_ref, center_ref,
                            loss_ref, new_center_ref,
                            *, ncrops, batch, student_temp, center_momentum):
    """Everything resident in VMEM; crop loop unrolled at trace time."""
    n_terms = 2 * (ncrops - 1)
    inv_temp = 1.0 / temp_ref[0]

    center = center_ref[...].astype(jnp.float32)            # (1, D)
    t_raw = teacher_ref[...].astype(jnp.float32)             # (2B, D)

    # teacher softmax with exact normalization (divide only the (2B,1) sums)
    t = (t_raw - center) * inv_temp
    t_max = jnp.max(t, axis=-1, keepdims=True)
    t_exp = jnp.exp(t - t_max)
    row_sum = jnp.sum(t_exp, axis=-1, keepdims=True)
    t_prob = t_exp * (1.0 / row_sum)

    q0 = t_prob[0:batch, :]
    q1 = t_prob[batch:2 * batch, :]
    q_both = q0 + q1
    c0 = jnp.sum(q0, axis=-1, keepdims=True)                 # (B,1) ~ 1
    c1 = jnp.sum(q1, axis=-1, keepdims=True)                 # (B,1) ~ 1
    cb = c0 + c1                                             # (B,1) ~ 2

    # center EMA update (raw teacher output, pre-update center)
    batch_center = jnp.sum(t_raw, axis=0, keepdims=True) * (1.0 / (2 * batch))
    new_center_ref[...] = (center * center_momentum
                           + batch_center * (1.0 - center_momentum))

    total = jnp.zeros((1, 1), jnp.float32)
    inv_stemp = 1.0 / student_temp
    for v in range(ncrops):                                  # static unroll
        s = student_ref[pl.ds(v * batch, batch), :].astype(jnp.float32) * inv_stemp
        s_max = jnp.max(s, axis=-1, keepdims=True)
        s_shift = s - s_max
        lse = jnp.log(jnp.sum(jnp.exp(s_shift), axis=-1, keepdims=True))  # (B,1)
        if v == 0:
            q, c = q1, c1        # student crop 0 pairs only with teacher crop 1
        elif v == 1:
            q, c = q0, c0        # student crop 1 pairs only with teacher crop 0
        else:
            q, c = q_both, cb    # local crops pair with both teacher crops
        # fused log-softmax cross term: no (B,D) log_sm materialization
        total = total + (jnp.sum(q * s_shift, keepdims=True)
                         - jnp.sum(c * lse, keepdims=True))

    loss_ref[...] = total * (-1.0 / (batch * n_terms))


# --------------------------------------------------------------------------
# Path 2: grid over student crops (streams one crop per step).
# --------------------------------------------------------------------------
def _dino_loss_crop_kernel(temp_ref, student_ref, teacher_hbm_ref, center_ref,
                           loss_ref, new_center_ref,
                           teacher_buf, dma_sem, q_both_ref, q1_ref,
                           c1_ref, cb_ref,
                           *, ncrops, batch, student_temp, center_momentum):
    """One grid step = one student crop.

    temp_ref        : SMEM (1,)        teacher temperature for this epoch
    student_ref     : VMEM (B, D)      current student crop (native dtype)
    teacher_hbm_ref : HBM  (2B, D)     raw teacher output (pl.ANY, manual DMA)
    center_ref      : VMEM (1, D)      resident (constant block index)
    loss_ref        : VMEM (1, 1)      resident accumulator -> scalar loss
    new_center_ref  : VMEM (1, D)      EMA-updated center (written at step 0)
    teacher_buf     : VMEM (2B, D)     single-buffered teacher copy (step 0)
    q_both_ref      : VMEM (B, D) bf16 scratch: q0 + q1
    q1_ref          : VMEM (B, D) bf16 scratch: teacher crop 1 probabilities
    c1_ref, cb_ref  : VMEM (B, 1) f32  row sums of the stored q1 / q_both
    """
    v = pl.program_id(0)
    n_terms = 2 * (ncrops - 1)

    # ---- step 0: pull teacher once (single-buffered), softmax, cache q's ----
    @pl.when(v == 0)
    def _():
        cp = pltpu.make_async_copy(teacher_hbm_ref, teacher_buf, dma_sem)
        cp.start()
        cp.wait()

        inv_temp = 1.0 / temp_ref[0]
        center = center_ref[...].astype(jnp.float32)
        t_raw = teacher_buf[...].astype(jnp.float32)         # (2B, D)

        t = (t_raw - center) * inv_temp
        t_max = jnp.max(t, axis=-1, keepdims=True)
        t_exp = jnp.exp(t - t_max)
        row_sum = jnp.sum(t_exp, axis=-1, keepdims=True)
        t_prob = t_exp * (1.0 / row_sum)                      # exact normalization

        q0 = t_prob[0:batch, :]
        q1 = t_prob[batch:2 * batch, :]
        q1_ref[...] = q1.astype(q1_ref.dtype)
        q_both_ref[...] = (q0 + q1).astype(q_both_ref.dtype)
        # row sums of the *stored* probabilities -> fused identity stays exact
        c1_ref[...] = jnp.sum(q1_ref[...].astype(jnp.float32),
                              axis=-1, keepdims=True)
        cb_ref[...] = jnp.sum(q_both_ref[...].astype(jnp.float32),
                              axis=-1, keepdims=True)

        # center EMA update (raw teacher output, pre-update center)
        batch_center = jnp.sum(t_raw, axis=0, keepdims=True) * (1.0 / (2 * batch))
        new_center_ref[...] = (center * center_momentum
                               + batch_center * (1.0 - center_momentum))
        loss_ref[...] = jnp.zeros_like(loss_ref)

    # ---- per-crop student stats, f32 compute from native (bf16) block ----
    s = student_ref[...].astype(jnp.float32) * (1.0 / student_temp)
    s_max = jnp.max(s, axis=-1, keepdims=True)
    s_shift = s - s_max
    lse = jnp.log(jnp.sum(jnp.exp(s_shift), axis=-1, keepdims=True))      # (B,1)

    # ---- fused cross terms: one (B,D) multiply + reduce per crop ----
    @pl.when(v == 0)
    def _():  # only teacher crop 1 pairs with student crop 0
        q = q1_ref[...].astype(jnp.float32)
        loss_ref[...] += (jnp.sum(q * s_shift, keepdims=True)
                          - jnp.sum(c1_ref[...] * lse, keepdims=True))

    @pl.when(v == 1)
    def _():  # only teacher crop 0 pairs with student crop 1
        q = q_both_ref[...].astype(jnp.float32) - q1_ref[...].astype(jnp.float32)
        c0 = cb_ref[...] - c1_ref[...]
        loss_ref[...] += (jnp.sum(q * s_shift, keepdims=True)
                          - jnp.sum(c0 * lse, keepdims=True))

    @pl.when(v >= 2)
    def _():  # local crops pair with both teacher crops
        q = q_both_ref[...].astype(jnp.float32)
        loss_ref[...] += (jnp.sum(q * s_shift, keepdims=True)
                          - jnp.sum(cb_ref[...] * lse, keepdims=True))

    # ---- finalize: negation + normalization as one scalar multiply ----
    @pl.when(v == ncrops - 1)
    def _():
        loss_ref[...] = loss_ref[...] * (-1.0 / (batch * n_terms))


# --------------------------------------------------------------------------
# Wrapper mirroring the PyTorch module.
# --------------------------------------------------------------------------
class DINOLossPallas:
    """JAX/Pallas port of DINOLoss (forward + center EMA update)."""

    def __init__(self, out_dim, ncrops, warmup_teacher_temp, teacher_temp,
                 warmup_teacher_temp_epochs, nepochs,
                 student_temp=0.1, center_momentum=0.9,
                 q_scratch_dtype=jnp.bfloat16,
                 fused_path_max_bytes=8 * 1024 * 1024):
        self.out_dim = out_dim
        self.ncrops = ncrops
        self.student_temp = float(student_temp)
        self.center_momentum = float(center_momentum)
        self.q_scratch_dtype = q_scratch_dtype
        self.fused_path_max_bytes = fused_path_max_bytes
        # buffer "center" initialised to zeros, as in register_buffer.
        self.center = jnp.zeros((1, out_dim), dtype=jnp.float32)
        self.teacher_temp_schedule = np.concatenate((
            np.linspace(warmup_teacher_temp, teacher_temp,
                        warmup_teacher_temp_epochs),
            np.ones(nepochs - warmup_teacher_temp_epochs) * teacher_temp,
        )).astype(np.float32)

    # -- helpers -----------------------------------------------------------
    @staticmethod
    def _vmem_limit(est_bytes):
        # never below a safe 32 MiB floor, never above 100 MiB.
        return int(min(max(est_bytes * 3 // 2, 32 * 1024 * 1024),
                       100 * 1024 * 1024))

    def _check_shapes(self, student_output, teacher_output):
        n_student, d = student_output.shape
        n_teacher, d2 = teacher_output.shape
        assert d == d2 == self.out_dim
        assert self.ncrops >= 2
        assert n_student % self.ncrops == 0 and n_teacher % 2 == 0
        batch = n_student // self.ncrops
        assert n_teacher == 2 * batch
        assert batch % 8 == 0, "batch must be a multiple of 8 (sublane tile)"
        return batch, d

    # -- path 1: single fused step ------------------------------------------
    def _call_fused(self, temp, student_output, teacher_output, batch, d):
        n_student = student_output.shape[0]
        n_teacher = teacher_output.shape[0]
        kernel = functools.partial(
            _dino_loss_fused_kernel, ncrops=self.ncrops, batch=batch,
            student_temp=self.student_temp, center_momentum=self.center_momentum)

        est = 6 * 4 * d * (n_student + n_teacher) + 16 * 4 * d + (1 << 21)
        return pl.pallas_call(
            kernel,
            out_shape=(
                jax.ShapeDtypeStruct((1, 1), jnp.float32),
                jax.ShapeDtypeStruct((1, d), jnp.float32),
            ),
            grid=(1,),
            in_specs=[
                pl.BlockSpec(memory_space=pltpu.MemorySpace.SMEM),       # temp
                pl.BlockSpec((n_student, d), lambda i: (0, 0)),          # student
                pl.BlockSpec((n_teacher, d), lambda i: (0, 0)),          # teacher
                pl.BlockSpec((1, d), lambda i: (0, 0)),                  # center
            ],
            out_specs=(
                pl.BlockSpec((1, 1), lambda i: (0, 0)),                  # loss
                pl.BlockSpec((1, d), lambda i: (0, 0)),                  # new center
            ),
            compiler_params=pltpu.CompilerParams(
                dimension_semantics=("arbitrary",),
                vmem_limit_bytes=self._vmem_limit(est)),
        )(temp, student_output, teacher_output, self.center)

    # -- path 2: grid over crops --------------------------------------------
    def _call_grid(self, temp, student_output, teacher_output, batch, d):
        kernel = functools.partial(
            _dino_loss_crop_kernel, ncrops=self.ncrops, batch=batch,
            student_temp=self.student_temp, center_momentum=self.center_momentum)

        s_bytes = jnp.dtype(student_output.dtype).itemsize
        t_bytes = jnp.dtype(teacher_output.dtype).itemsize
        q_bytes = jnp.dtype(self.q_scratch_dtype).itemsize
        est = (2 * batch * d * s_bytes            # student block, 2 pipeline bufs
               + 2 * batch * d * t_bytes          # single-buffered teacher copy
               + 2 * batch * d * q_bytes          # q1 + q_both scratch
               + 6 * 4 * 2 * batch * d            # step-0 f32 softmax temporaries
               + 4 * 4 * batch * d                # per-crop f32 temporaries
               + 8 * 4 * d + (1 << 21))

        return pl.pallas_call(
            kernel,
            out_shape=(
                jax.ShapeDtypeStruct((1, 1), jnp.float32),
                jax.ShapeDtypeStruct((1, d), jnp.float32),
            ),
            grid=(self.ncrops,),
            in_specs=[
                pl.BlockSpec(memory_space=pltpu.MemorySpace.SMEM),       # temp
                pl.BlockSpec((batch, d), lambda v: (v, 0)),              # student crop v
                pl.BlockSpec(memory_space=pl.ANY),                       # teacher (HBM)
                pl.BlockSpec((1, d), lambda v: (0, 0)),                  # center (resident)
            ],
            out_specs=(
                pl.BlockSpec((1, 1), lambda v: (0, 0)),                  # loss accumulator
                pl.BlockSpec((1, d), lambda v: (0, 0)),                  # new center
            ),
            scratch_shapes=[
                pltpu.VMEM((2 * batch, d), teacher_output.dtype),  # teacher (1 buf)
                pltpu.SemaphoreType.DMA(()),                       # teacher DMA sem
                pltpu.VMEM((batch, d), self.q_scratch_dtype),      # q_both = q0 + q1
                pltpu.VMEM((batch, d), self.q_scratch_dtype),      # q1
                pltpu.VMEM((batch, 1), jnp.float32),               # rowsum(q1)
                pltpu.VMEM((batch, 1), jnp.float32),               # rowsum(q_both)
            ],
            compiler_params=pltpu.CompilerParams(
                dimension_semantics=("arbitrary",),  # crop axis carries accumulator
                vmem_limit_bytes=self._vmem_limit(est)),
        )(temp, student_output, teacher_output, self.center)

    # -- forward ------------------------------------------------------------
    def __call__(self, student_output, teacher_output, epoch, mode=None):
        batch, d = self._check_shapes(student_output, teacher_output)
        temp = jnp.asarray(
            [self.teacher_temp_schedule[int(epoch)]], dtype=jnp.float32)

        if mode is None:
            ws = 4 * d * (student_output.shape[0] + teacher_output.shape[0])
            mode = "fused" if ws <= self.fused_path_max_bytes else "grid"

        if mode == "fused":
            loss, new_center = self._call_fused(
                temp, student_output, teacher_output, batch, d)
        elif mode == "grid":
            loss, new_center = self._call_grid(
                temp, student_output, teacher_output, batch, d)
        else:
            raise ValueError(f"unknown mode: {mode}")

        # mimic the in-place buffer update of the PyTorch module
        self.center = new_center
        return loss[0, 0]


# --------------------------------------------------------------------------
# Pure-JAX reference mirroring the PyTorch forward (f32 compute).
# --------------------------------------------------------------------------
def _reference(student_output, teacher_output, center, temp,
               ncrops, student_temp):
    s = student_output.astype(jnp.float32) / student_temp
    t = jax.nn.softmax(
        (teacher_output.astype(jnp.float32) - center) / temp, axis=-1)
    batch = student_output.shape[0] // ncrops
    total, n = 0.0, 0
    for iq in range(2):
        q = t[iq * batch:(iq + 1) * batch]
        for v in range(ncrops):
            if v == iq:
                continue
            lsm = jax.nn.log_softmax(s[v * batch:(v + 1) * batch], axis=-1)
            total = total + jnp.sum(-q * lsm, axis=-1).mean()
            n += 1
    return total / n


if __name__ == "__main__":
    # small, DINO-like shapes: out_dim=256, ncrops=4 (2 global + 2 local), B=16
    out_dim, ncrops, batch = 256, 4, 16
    epoch = 3

    module = DINOLossPallas(
        out_dim=out_dim, ncrops=ncrops,
        warmup_teacher_temp=0.04, teacher_temp=0.07,
        warmup_teacher_temp_epochs=5, nepochs=20,
        student_temp=0.1, center_momentum=0.9,
    )

    key = jax.random.PRNGKey(0)
    k_s, k_t = jax.random.split(key)
    # native bf16 inputs (halves HBM->VMEM bytes); kernels upcast internally
    student_output = jax.random.normal(
        k_s, (ncrops * batch, out_dim), dtype=jnp.float32).astype(jnp.bfloat16)
    teacher_output = jax.random.normal(
        k_t, (2 * batch, out_dim), dtype=jnp.float32).astype(jnp.bfloat16)

    zero_center = jnp.zeros((1, out_dim), dtype=jnp.float32)
    temp = float(module.teacher_temp_schedule[epoch])
    ref_loss = _reference(student_output, teacher_output, zero_center, temp,
                          ncrops, module.student_temp)
    ref_center = (zero_center * module.center_momentum
                  + (jnp.sum(teacher_output.astype(jnp.float32),
                             axis=0, keepdims=True) / (2 * batch))
                  * (1 - module.center_momentum))

    # exercise both paths: the fused single-step path (auto choice at these
    # shapes) and the streaming grid-over-crops path.
    for mode in ("fused", "grid"):
        module.center = zero_center
        loss = module(student_output, teacher_output, epoch, mode=mode)
        loss = jax.block_until_ready(loss)
        new_center = jax.block_until_ready(module.center)
        assert jnp.allclose(loss, ref_loss, atol=2e-2, rtol=1e-2), (
            mode, loss, ref_loss)
        assert jnp.allclose(new_center, ref_center, atol=1e-5, rtol=1e-5), mode

    print("KERNEL_OK")
</pallas_src>

<mosaic_0001>
module attributes {stable_mosaic.version = 11 : i64} {
  func.func @_dino_loss_fused_kernel(%arg0: i32, %arg1: memref<1xf32, #tpu.memory_space<smem>>, %arg2: memref<64x256xbf16, #tpu.memory_space<vmem>>, %arg3: memref<32x256xbf16, #tpu.memory_space<vmem>>, %arg4: memref<1x256xf32, #tpu.memory_space<vmem>>, %arg5: memref<1x1xf32, #tpu.memory_space<vmem>>, %arg6: memref<1x256xf32, #tpu.memory_space<vmem>>) attributes {dimension_semantics = [#tpu.dimension_semantics<arbitrary>], iteration_bounds = array<i64: 1>, scalar_prefetch = 0 : i64, scratch_operands = 0 : i64, tpu.core_type = #tpu.core_type<tc>, window_params = [{transform_indices = @transform_0, window_bounds = array<i64: 1>}, {pipeline_mode = #tpu.pipeline_mode<synchronous>, transform_indices = @transform_1, window_bounds = array<i64: 64, 256>}, {pipeline_mode = #tpu.pipeline_mode<synchronous>, transform_indices = @transform_2, window_bounds = array<i64: 32, 256>}, {pipeline_mode = #tpu.pipeline_mode<synchronous>, transform_indices = @transform_3, window_bounds = array<i64: 1, 256>}, {pipeline_mode = #tpu.pipeline_mode<synchronous>, transform_indices = @transform_4, window_bounds = array<i64: 1, 1>}, {pipeline_mode = #tpu.pipeline_mode<synchronous>, transform_indices = @transform_5, window_bounds = array<i64: 1, 256>}]} {
    %c0 = arith.constant 0 : index
    %0 = memref.load %arg1[%c0] : memref<1xf32, #tpu.memory_space<smem>>
    %cst = arith.constant 1.000000e+00 : f32
    %1 = arith.divf %cst, %0 : f32
    %c0_0 = arith.constant 0 : index
    %c0_1 = arith.constant 0 : index
    %2 = vector.load %arg4[%c0_0, %c0_1] : memref<1x256xf32, #tpu.memory_space<vmem>>, vector<1x256xf32>
    %c0_2 = arith.constant 0 : index
    %c0_3 = arith.constant 0 : index
    %3 = vector.load %arg3[%c0_2, %c0_3] : memref<32x256xbf16, #tpu.memory_space<vmem>>, vector<32x256xbf16>
    %4 = arith.extf %3 : vector<32x256xbf16> to vector<32x256xf32>
    %5 = vector.broadcast %2 : vector<1x256xf32> to vector<32x256xf32>
    %6 = arith.subf %4, %5 : vector<32x256xf32>
    %7 = vector.broadcast %1 : f32 to vector<32x256xf32>
    %8 = arith.mulf %6, %7 : vector<32x256xf32>
    %cst_4 = arith.constant dense<0xFF800000> : vector<32xf32>
    %9 = vector.multi_reduction <maximumf>, %8, %cst_4 [1] : vector<32x256xf32> to vector<32xf32>
    %10 = vector.shape_cast %9 : vector<32xf32> to vector<32x1xf32>
    %11 = vector.broadcast %10 : vector<32x1xf32> to vector<32x256xf32>
    %12 = arith.subf %8, %11 : vector<32x256xf32>
    %13 = math.exp %12 : vector<32x256xf32>
    %cst_5 = arith.constant dense<0.000000e+00> : vector<32xf32>
    %14 = vector.multi_reduction <add>, %13, %cst_5 [1] : vector<32x256xf32> to vector<32xf32>
    %15 = vector.shape_cast %14 : vector<32xf32> to vector<32x1xf32>
    %cst_6 = arith.constant 1.000000e+00 : f32
    %16 = vector.broadcast %cst_6 : f32 to vector<32x1xf32>
    %17 = arith.divf %16, %15 : vector<32x1xf32>
    %18 = vector.broadcast %17 : vector<32x1xf32> to vector<32x256xf32>
    %19 = arith.mulf %13, %18 : vector<32x256xf32>
    %20 = vector.extract_strided_slice %19 {offsets = [0, 0], sizes = [16, 256], strides = [1, 1]} : vector<32x256xf32> to vector<16x256xf32>
    %21 = vector.extract_strided_slice %19 {offsets = [16, 0], sizes = [16, 256], strides = [1, 1]} : vector<32x256xf32> to vector<16x256xf32>
    %22 = arith.addf %20, %21 : vector<16x256xf32>
    %cst_7 = arith.constant dense<0.000000e+00> : vector<16xf32>
    %23 = vector.multi_reduction <add>, %20, %cst_7 [1] : vector<16x256xf32> to vector<16xf32>
    %24 = vector.shape_cast %23 : vector<16xf32> to vector<16x1xf32>
    %cst_8 = arith.constant dense<0.000000e+00> : vector<16xf32>
    %25 = vector.multi_reduction <add>, %21, %cst_8 [1] : vector<16x256xf32> to vector<16xf32>
    %26 = vector.shape_cast %25 : vector<16xf32> to vector<16x1xf32>
    %27 = arith.addf %24, %26 : vector<16x1xf32>
    %cst_9 = arith.constant dense<0.000000e+00> : vector<256xf32>
    %28 = vector.multi_reduction <add>, %4, %cst_9 [0] : vector<32x256xf32> to vector<256xf32>
    %29 = vector.shape_cast %28 : vector<256xf32> to vector<1x256xf32>
    %cst_10 = arith.constant 3.125000e-02 : f32
    %30 = vector.broadcast %cst_10 : f32 to vector<1x256xf32>
    %31 = arith.mulf %29, %30 : vector<1x256xf32>
    %cst_11 = arith.constant 0.899999976 : f32
    %32 = vector.broadcast %cst_11 : f32 to vector<1x256xf32>
    %33 = arith.mulf %2, %32 : vector<1x256xf32>
    %cst_12 = arith.constant 1.000000e-01 : f32
    %34 = vector.broadcast %cst_12 : f32 to vector<1x256xf32>
    %35 = arith.mulf %31, %34 : vector<1x256xf32>
    %36 = arith.addf %33, %35 : vector<1x256xf32>
    %c0_13 = arith.constant 0 : index
    %c0_14 = arith.constant 0 : index
    %37 = vector.load %arg6[%c0_13, %c0_14] : memref<1x256xf32, #tpu.memory_space<vmem>>, vector<1x256xf32>
    tpu.vector_store %arg6[%c0_13, %c0_14], %36 {strides = array<i32>} : memref<1x256xf32, #tpu.memory_space<vmem>>, vector<1x256xf32>,
    %cst_15 = arith.constant 0.000000e+00 : f32
    %38 = vector.broadcast %cst_15 : f32 to vector<1x1xf32>
    %c0_16 = arith.constant 0 : index
    %c0_17 = arith.constant 0 : index
    %39 = vector.load %arg2[%c0_16, %c0_17] : memref<64x256xbf16, #tpu.memory_space<vmem>>, vector<16x256xbf16>
    %40 = arith.extf %39 : vector<16x256xbf16> to vector<16x256xf32>
    %cst_18 = arith.constant 1.000000e+01 : f32
    %41 = vector.broadcast %cst_18 : f32 to vector<16x256xf32>
    %42 = arith.mulf %40, %41 : vector<16x256xf32>
    %cst_19 = arith.constant dense<0xFF800000> : vector<16xf32>
    %43 = vector.multi_reduction <maximumf>, %42, %cst_19 [1] : vector<16x256xf32> to vector<16xf32>
    %44 = vector.shape_cast %43 : vector<16xf32> to vector<16x1xf32>
    %45 = vector.broadcast %44 : vector<16x1xf32> to vector<16x256xf32>
    %46 = arith.subf %42, %45 : vector<16x256xf32>
    %47 = math.exp %46 : vector<16x256xf32>
    %cst_20 = arith.constant dense<0.000000e+00> : vector<16xf32>
    %48 = vector.multi_reduction <add>, %47, %cst_20 [1] : vector<16x256xf32> to vector<16xf32>
    %49 = vector.shape_cast %48 : vector<16xf32> to vector<16x1xf32>
    %50 = math.log %49 : vector<16x1xf32>
    %51 = arith.mulf %21, %46 : vector<16x256xf32>
    %52 = vector.shape_cast %51 : vector<16x256xf32> to vector<1x16x256xf32>
    %cst_21 = arith.constant dense<0.000000e+00> : vector<1xf32>
    %53 = vector.multi_reduction <add>, %52, %cst_21 [1, 2] : vector<1x16x256xf32> to vector<1xf32>
    %54 = vector.shape_cast %53 : vector<1xf32> to vector<1x1x1xf32>
    %55 = vector.extract %54[0, 0, 0] : f32 from vector<1x1x1xf32>
    %56 = vector.broadcast %55 : f32 to vector<1x1xf32>
    %57 = arith.mulf %26, %50 : vector<16x1xf32>
    %58 = vector.shape_cast %57 : vector<16x1xf32> to vector<1x16x1xf32>
    %cst_22 = arith.constant dense<0.000000e+00> : vector<1xf32>
    %59 = vector.multi_reduction <add>, %58, %cst_22 [1, 2] : vector<1x16x1xf32> to vector<1xf32>
    %60 = vector.shape_cast %59 : vector<1xf32> to vector<1x1x1xf32>
    %61 = vector.extract %60[0, 0, 0] : f32 from vector<1x1x1xf32>
    %62 = vector.broadcast %61 : f32 to vector<1x1xf32>
    %63 = arith.subf %56, %62 : vector<1x1xf32>
    %64 = arith.addf %38, %63 : vector<1x1xf32>
    %c16 = arith.constant 16 : index
    %c0_23 = arith.constant 0 : index
    %65 = vector.load %arg2[%c16, %c0_23] : memref<64x256xbf16, #tpu.memory_space<vmem>>, vector<16x256xbf16>
    %66 = arith.extf %65 : vector<16x256xbf16> to vector<16x256xf32>
    %cst_24 = arith.constant 1.000000e+01 : f32
    %67 = vector.broadcast %cst_24 : f32 to vector<16x256xf32>
    %68 = arith.mulf %66, %67 : vector<16x256xf32>
    %cst_25 = arith.constant dense<0xFF800000> : vector<16xf32>
    %69 = vector.multi_reduction <maximumf>, %68, %cst_25 [1] : vector<16x256xf32> to vector<16xf32>
    %70 = vector.shape_cast %69 : vector<16xf32> to vector<16x1xf32>
    %71 = vector.broadcast %70 : vector<16x1xf32> to vector<16x256xf32>
    %72 = arith.subf %68, %71 : vector<16x256xf32>
    %73 = math.exp %72 : vector<16x256xf32>
    %cst_26 = arith.constant dense<0.000000e+00> : vector<16xf32>
    %74 = vector.multi_reduction <add>, %73, %cst_26 [1] : vector<16x256xf32> to vector<16xf32>
    %75 = vector.shape_cast %74 : vector<16xf32> to vector<16x1xf32>
    %76 = math.log %75 : vector<16x1xf32>
    %77 = arith.mulf %20, %72 : vector<16x256xf32>
    %78 = vector.shape_cast %77 : vector<16x256xf32> to vector<1x16x256xf32>
    %cst_27 = arith.constant dense<0.000000e+00> : vector<1xf32>
    %79 = vector.multi_reduction <add>, %78, %cst_27 [1, 2] : vector<1x16x256xf32> to vector<1xf32>
    %80 = vector.shape_cast %79 : vector<1xf32> to vector<1x1x1xf32>
    %81 = vector.extract %80[0, 0, 0] : f32 from vector<1x1x1xf32>
    %82 = vector.broadcast %81 : f32 to vector<1x1xf32>
    %83 = arith.mulf %24, %76 : vector<16x1xf32>
    %84 = vector.shape_cast %83 : vector<16x1xf32> to vector<1x16x1xf32>
    %cst_28 = arith.constant dense<0.000000e+00> : vector<1xf32>
    %85 = vector.multi_reduction <add>, %84, %cst_28 [1, 2] : vector<1x16x1xf32> to vector<1xf32>
    %86 = vector.shape_cast %85 : vector<1xf32> to vector<1x1x1xf32>
    %87 = vector.extract %86[0, 0, 0] : f32 from vector<1x1x1xf32>
    %88 = vector.broadcast %87 : f32 to vector<1x1xf32>
    %89 = arith.subf %82, %88 : vector<1x1xf32>
    %90 = arith.addf %64, %89 : vector<1x1xf32>
    %c32 = arith.constant 32 : index
    %c0_29 = arith.constant 0 : index
    %91 = vector.load %arg2[%c32, %c0_29] : memref<64x256xbf16, #tpu.memory_space<vmem>>, vector<16x256xbf16>
    %92 = arith.extf %91 : vector<16x256xbf16> to vector<16x256xf32>
    %cst_30 = arith.constant 1.000000e+01 : f32
    %93 = vector.broadcast %cst_30 : f32 to vector<16x256xf32>
    %94 = arith.mulf %92, %93 : vector<16x256xf32>
    %cst_31 = arith.constant dense<0xFF800000> : vector<16xf32>
    %95 = vector.multi_reduction <maximumf>, %94, %cst_31 [1] : vector<16x256xf32> to vector<16xf32>
    %96 = vector.shape_cast %95 : vector<16xf32> to vector<16x1xf32>
    %97 = vector.broadcast %96 : vector<16x1xf32> to vector<16x256xf32>
    %98 = arith.subf %94, %97 : vector<16x256xf32>
    %99 = math.exp %98 : vector<16x256xf32>
    %cst_32 = arith.constant dense<0.000000e+00> : vector<16xf32>
    %100 = vector.multi_reduction <add>, %99, %cst_32 [1] : vector<16x256xf32> to vector<16xf32>
    %101 = vector.shape_cast %100 : vector<16xf32> to vector<16x1xf32>
    %102 = math.log %101 : vector<16x1xf32>
    %103 = arith.mulf %22, %98 : vector<16x256xf32>
    %104 = vector.shape_cast %103 : vector<16x256xf32> to vector<1x16x256xf32>
    %cst_33 = arith.constant dense<0.000000e+00> : vector<1xf32>
    %105 = vector.multi_reduction <add>, %104, %cst_33 [1, 2] : vector<1x16x256xf32> to vector<1xf32>
    %106 = vector.shape_cast %105 : vector<1xf32> to vector<1x1x1xf32>
    %107 = vector.extract %106[0, 0, 0] : f32 from vector<1x1x1xf32>
    %108 = vector.broadcast %107 : f32 to vector<1x1xf32>
    %109 = arith.mulf %27, %102 : vector<16x1xf32>
    %110 = vector.shape_cast %109 : vector<16x1xf32> to vector<1x16x1xf32>
    %cst_34 = arith.constant dense<0.000000e+00> : vector<1xf32>
    %111 = vector.multi_reduction <add>, %110, %cst_34 [1, 2] : vector<1x16x1xf32> to vector<1xf32>
    %112 = vector.shape_cast %111 : vector<1xf32> to vector<1x1x1xf32>
    %113 = vector.extract %112[0, 0, 0] : f32 from vector<1x1x1xf32>
    %114 = vector.broadcast %113 : f32 to vector<1x1xf32>
    %115 = arith.subf %108, %114 : vector<1x1xf32>
    %116 = arith.addf %90, %115 : vector<1x1xf32>
    %c48 = arith.constant 48 : index
    %c0_35 = arith.constant 0 : index
    %117 = vector.load %arg2[%c48, %c0_35] : memref<64x256xbf16, #tpu.memory_space<vmem>>, vector<16x256xbf16>
    %118 = arith.extf %117 : vector<16x256xbf16> to vector<16x256xf32>
    %cst_36 = arith.constant 1.000000e+01 : f32
    %119 = vector.broadcast %cst_36 : f32 to vector<16x256xf32>
    %120 = arith.mulf %118, %119 : vector<16x256xf32>
    %cst_37 = arith.constant dense<0xFF800000> : vector<16xf32>
    %121 = vector.multi_reduction <maximumf>, %120, %cst_37 [1] : vector<16x256xf32> to vector<16xf32>
    %122 = vector.shape_cast %121 : vector<16xf32> to vector<16x1xf32>
    %123 = vector.broadcast %122 : vector<16x1xf32> to vector<16x256xf32>
    %124 = arith.subf %120, %123 : vector<16x256xf32>
    %125 = math.exp %124 : vector<16x256xf32>
    %cst_38 = arith.constant dense<0.000000e+00> : vector<16xf32>
    %126 = vector.multi_reduction <add>, %125, %cst_38 [1] : vector<16x256xf32> to vector<16xf32>
    %127 = vector.shape_cast %126 : vector<16xf32> to vector<16x1xf32>
    %128 = math.log %127 : vector<16x1xf32>
    %129 = arith.mulf %22, %124 : vector<16x256xf32>
    %130 = vector.shape_cast %129 : vector<16x256xf32> to vector<1x16x256xf32>
    %cst_39 = arith.constant dense<0.000000e+00> : vector<1xf32>
    %131 = vector.multi_reduction <add>, %130, %cst_39 [1, 2] : vector<1x16x256xf32> to vector<1xf32>
    %132 = vector.shape_cast %131 : vector<1xf32> to vector<1x1x1xf32>
    %133 = vector.extract %132[0, 0, 0] : f32 from vector<1x1x1xf32>
    %134 = vector.broadcast %133 : f32 to vector<1x1xf32>
    %135 = arith.mulf %27, %128 : vector<16x1xf32>
    %136 = vector.shape_cast %135 : vector<16x1xf32> to vector<1x16x1xf32>
    %cst_40 = arith.constant dense<0.000000e+00> : vector<1xf32>
    %137 = vector.multi_reduction <add>, %136, %cst_40 [1, 2] : vector<1x16x1xf32> to vector<1xf32>
    %138 = vector.shape_cast %137 : vector<1xf32> to vector<1x1x1xf32>
    %139 = vector.extract %138[0, 0, 0] : f32 from vector<1x1x1xf32>
    %140 = vector.broadcast %139 : f32 to vector<1x1xf32>
    %141 = arith.subf %134, %140 : vector<1x1xf32>
    %142 = arith.addf %116, %141 : vector<1x1xf32>
    %cst_41 = arith.constant -0.010416667 : f32
    %143 = vector.broadcast %cst_41 : f32 to vector<1x1xf32>
    %144 = arith.mulf %142, %143 : vector<1x1xf32>
    %c0_42 = arith.constant 0 : index
    %c0_43 = arith.constant 0 : index
    %145 = vector.load %arg5[%c0_42, %c0_43] : memref<1x1xf32, #tpu.memory_space<vmem>>, vector<1x1xf32>
    tpu.vector_store %arg5[%c0_42, %c0_43], %144 {strides = array<i32>} : memref<1x1xf32, #tpu.memory_space<vmem>>, vector<1x1xf32>,
    return
  }
  func.func @transform_0(%arg0: i32) -> i32 {
    %c0_i32 = arith.constant 0 : i32
    %c0_i32_0 = arith.constant 0 : i32
    return %c0_i32 : i32
  }
  func.func @transform_1(%arg0: i32) -> (i32, i32) {
    %c0_i32 = arith.constant 0 : i32
    %c0_i32_0 = arith.constant 0 : i32
    %c0_i32_1 = arith.constant 0 : i32
    return %c0_i32, %c0_i32_0 : i32, i32
  }
  func.func @transform_2(%arg0: i32) -> (i32, i32) {
    %c0_i32 = arith.constant 0 : i32
    %c0_i32_0 = arith.constant 0 : i32
    %c0_i32_1 = arith.constant 0 : i32
    return %c0_i32, %c0_i32_0 : i32, i32
  }
  func.func @transform_3(%arg0: i32) -> (i32, i32) {
    %c0_i32 = arith.constant 0 : i32
    %c0_i32_0 = arith.constant 0 : i32
    %c0_i32_1 = arith.constant 0 : i32
    return %c0_i32, %c0_i32_0 : i32, i32
  }
  func.func @transform_4(%arg0: i32) -> (i32, i32) {
    %c0_i32 = arith.constant 0 : i32
    %c0_i32_0 = arith.constant 0 : i32
    %c0_i32_1 = arith.constant 0 : i32
    return %c0_i32, %c0_i32_0 : i32, i32
  }
  func.func @transform_5(%arg0: i32) -> (i32, i32) {
    %c0_i32 = arith.constant 0 : i32
    %c0_i32_0 = arith.constant 0 : i32
    %c0_i32_1 = arith.constant 0 : i32
    return %c0_i32, %c0_i32_0 : i32, i32
  }
}

</mosaic_0001>

<llo_original>
// kernel: tpu_custom_call.1
$region0: #{tpu_custom_call.1}
  #allocation0 [shape = 'u32[]', space=smem, size = 0x4, offset = 0x4, fixed_abs, tag = 'smem constant byte address 0x4 - core index']
  #allocation1 [shape = 'u32[72,128]{1,0:T(1,128)}', space=vmem, size = 0x9000, scoped, tag = 'internal scratch']
  #allocation2 [shape = 'f32[1]{0:T(128)S(6)}', space=smem, size = 0x200, scoped, tag = 'scoped memory for tpu_custom_call.1']
  %s0 = inlined_call_operand.<no memory space> [shape: f32[1], index: 0, kind: input, shape index: {}]
  %s1 = inlined_call_operand.hbm [shape: bf16[64,256], index: 1, kind: input, shape index: {}]
  %s2 = inlined_call_operand.hbm [shape: bf16[32,256], index: 2, kind: input, shape index: {}]
  %s3 = inlined_call_operand.vmem [shape: f32[1,256], index: 3, kind: input, shape index: {}]
  %s4 = inlined_call_operand.hbm [shape: f32[1,1], index: 4, kind: output, shape index: {0}]
  %s5 = inlined_call_operand.hbm [shape: f32[1,256], index: 5, kind: output, shape index: {1}]
  %6 = xla_tuple %s4, %s5
  %s7 = sld [smem:[#allocation0]]
  $region42: #{tpu_custom_call.1} parent=0
    _
  %s9 = ssub.s32 1, %s7
  %s10 = scalar_select 0, %s9, %s7
  %11 = sst [smem:[#allocation2]] %s0
  $region1: #{tpu_custom_call.1} parent=0
    #allocation3 [shape = 'u8[32768]{0}', space=vmem, size = 0x8000, scoped, tag = 'input window, operand 1, single buffered']
    #allocation4 [shape = 's32[1]{0}', space=sflag, size = 0x4, scoped, tag = 'scoped memory for tpu_custom_call.1']
    #allocation5 [shape = 's32[1]{0}', space=sflag, size = 0x4, scoped, tag = 'scoped memory for tpu_custom_call.1']
    #allocation6 [shape = 'u8[16384]{0}', space=vmem, size = 0x4000, scoped, tag = 'input window, operand 2, single buffered']
    #allocation7 [shape = 's32[1]{0}', space=sflag, size = 0x4, scoped, tag = 'scoped memory for tpu_custom_call.1']
    #allocation8 [shape = 'u8[512]{0}', space=vmem, size = 0x400, scoped, tag = 'output window, operand 0, single buffered']
    #allocation9 [shape = 'u8[1024]{0}', space=vmem, size = 0x400, scoped, tag = 'output window, operand 1, single buffered']
    #allocation10 [shape = 's32[1]{0}', space=sflag, size = 0x4, scoped, tag = 'scoped memory for tpu_custom_call.1']
    %12 = vsyncpa [#allocation4], 0
    %13 = vsyncpa [#allocation7], 0
    %14 = vsyncpa [#allocation5], 0
    %15 = vsyncpa [#allocation10], 0
    // Predicated region
    $region2: #{tpu_custom_call.1} parent=1 // pred_check
      _
    $region3: #{tpu_custom_call.1} parent=1 // pred_check_branch
      %17 = sbr.rel (0) target = $region5
    $region4: #{tpu_custom_call.1} parent=1 // pred_region
      _
    $region5: #{tpu_custom_call.1} parent=1 // pred_fallthru
      _
    // Predicated region
    $region6: #{tpu_custom_call.1} parent=1 // pred_check
      _
    $region7: #{tpu_custom_call.1} parent=1 // pred_check_branch
      %19 = sbr.rel (0) target = $region9
    $region8: #{tpu_custom_call.1} parent=1 // pred_region
      %21 = vsyncadd [#allocation4], 0
      %s22 = sshll.u32 %s1, 4
      %s23 = int_to_ptr.hbm [resolvable:$true] %s22
      %s24 = sshll.u32 [#allocation3], 4
      %s25 = int_to_ptr.vmem [resolvable:$true] %s24
      %30 = dma.hbm_to_vmem [thread:$0]  %s23, 1024, %s25, [#allocation4], 128, 128, 8
    $region9: #{tpu_custom_call.1} parent=1 // pred_fallthru
      _
    // Predicated region
    $region10: #{tpu_custom_call.1} parent=1 // pred_check
      _
    $region11: #{tpu_custom_call.1} parent=1 // pred_check_branch
      %32 = sbr.rel (0) target = $region13
    $region12: #{tpu_custom_call.1} parent=1 // pred_region
      %34 = vsyncadd [#allocation7], 0
      %s35 = sshll.u32 %s2, 4
      %s36 = int_to_ptr.hbm [resolvable:$true] %s35
      %s37 = sshll.u32 [#allocation6], 4
      %s38 = int_to_ptr.vmem [resolvable:$true] %s37
      %43 = dma.hbm_to_vmem [thread:$0]  %s36, 512, %s38, [#allocation7], 128, 128, 8
    $region13: #{tpu_custom_call.1} parent=1 // pred_fallthru
      _
    // Predicated region
    $region14: #{tpu_custom_call.1} parent=1 // pred_check
      _
    $region15: #{tpu_custom_call.1} parent=1 // pred_check_branch
      %45 = sbr.rel (0) target = $region17
    $region16: #{tpu_custom_call.1} parent=1 // pred_region
      _
    $region17: #{tpu_custom_call.1} parent=1 // pred_fallthru
      _
    // Predicated region
    $region18: #{tpu_custom_call.1} parent=1 // pred_check
      _
    $region19: #{tpu_custom_call.1} parent=1 // pred_check_branch
      %47 = sbr.rel (0) target = $region21
    $region20: #{tpu_custom_call.1} parent=1 // pred_region
      %49 = dma.done [#allocation4], 1024
    $region21: #{tpu_custom_call.1} parent=1 // pred_fallthru
      _
    // Predicated region
    $region22: #{tpu_custom_call.1} parent=1 // pred_check
      _
    $region23: #{tpu_custom_call.1} parent=1 // pred_check_branch
      %51 = sbr.rel (0) target = $region25
    $region24: #{tpu_custom_call.1} parent=1 // pred_region
      %53 = dma.done [#allocation7], 512
    $region25: #{tpu_custom_call.1} parent=1 // pred_fallthru
      _
    %s54 = sld [smem:[#allocation2]]
    %v55 = vstv %s54
    %v56 = vrcp.pop %v55
    %v57 = vmul.f32 %v55, %v56
    %v58 = vsub.f32 1.0, %v57
    %v59 = vmul.f32 %v56, %v58
    %v60 = vadd.f32 %v56, %v59
    %vm61 = vweird.f32 %v55
    %vm62 = vweird.f32 %v56
    %vm63 = vmor %vm61, %vm62
    %v64 = vsel %vm63, %v56, %v60
    %v65 = vand.u32 2147483647, %v55
    %vm66 = vcmp.eq.f32.partialorder %v65, 8.507059e+37
    %v67 = vand.u32 %v55, 2147483648
    %v68 = vor.u32 1.1754944e-38, %v67
    %v69 = vsel %vm66, %v68, %v64
    %s70 = vtos %v69
    %v71 = vld [vmem:[%s3] sm:$0x3]
    %v72 = vld [vmem:[#allocation6] sm:$0xff]
    %v73 = vld [vmem:[#allocation6 + $0x8] sm:$0xff]
    %v74 = vld [vmem:[#allocation6 + $0x10] sm:$0xff]
    %v75 = vld [vmem:[#allocation6 + $0x18] sm:$0xff]
    %v76 = vunpack.c.l.bf16 %v72
    %v77 = vunpack.c.h.bf16 %v72
    %v78 = vunpack.c.l.bf16 %v73
    %v79 = vunpack.c.h.bf16 %v73
    %v80 = vunpack.c.l.bf16 %v74
    %v81 = vunpack.c.h.bf16 %v74
    %v82 = vunpack.c.l.bf16 %v75
    %v83 = vunpack.c.h.bf16 %v75
    %v85 = vperm.slane %v71, 0
    %v86 = vperm.slane %v71, 1
    %v89 = vsub.f32 %v76, %v85
    %v90 = vsub.f32 %v77, %v86
    %v91 = vsub.f32 %v78, %v85
    %v92 = vsub.f32 %v79, %v86
    %v93 = vsub.f32 %v80, %v85
    %v94 = vsub.f32 %v81, %v86
    %v95 = vsub.f32 %v82, %v85
    %v96 = vsub.f32 %v83, %v86
    %v97 = vstv %s70
    %v98 = vmul.f32 %v89, %v97
    %v99 = vmul.f32 %v90, %v97
    %v100 = vmul.f32 %v91, %v97
    %v101 = vmul.f32 %v92, %v97
    %v102 = vmul.f32 %v93, %v97
    %v103 = vmul.f32 %v94, %v97
    %v104 = vmul.f32 %v95, %v97
    %v105 = vmul.f32 %v96, %v97
    %v106 = vmax.f32 %v98, %v99
    %107 = vmax.xlane.f32.xlu0 %v106
    %v108 = vpop.xlane.xlu0 %107
    %v109 = vmax.f32 %v100, %v101
    %110 = vmax.xlane.f32.xlu0 %v109
    %v111 = vpop.xlane.xlu0 %110
    %v112 = vmax.f32 %v102, %v103
    %113 = vmax.xlane.f32.xlu0 %v112
    %v114 = vpop.xlane.xlu0 %113
    %v115 = vmax.f32 %v104, %v105
    %116 = vmax.xlane.f32.xlu0 %v115
    %v117 = vpop.xlane.xlu0 %116
    %v118 = vsub.f32 %v98, %v108
    %v119 = vsub.f32 %v99, %v108
    %v120 = vsub.f32 %v100, %v111
    %v121 = vsub.f32 %v101, %v111
    %v122 = vsub.f32 %v102, %v114
    %v123 = vsub.f32 %v103, %v114
    %v124 = vsub.f32 %v104, %v117
    %v125 = vsub.f32 %v105, %v117
    %v126 = vmul.f32 %v118, 1.442695
    %v127 = vpow.pop %v126
    %v128 = vmul.f32 %v119, 1.442695
    %v129 = vpow.pop %v128
    %v130 = vmul.f32 %v120, 1.442695
    %v131 = vpow.pop %v130
    %v132 = vmul.f32 %v121, 1.442695
    %v133 = vpow.pop %v132
    %v134 = vmul.f32 %v122, 1.442695
    %v135 = vpow.pop %v134
    %v136 = vmul.f32 %v123, 1.442695
    %v137 = vpow.pop %v136
    %v138 = vmul.f32 %v124, 1.442695
    %v139 = vpow.pop %v138
    %v140 = vmul.f32 %v125, 1.442695
    %v141 = vpow.pop %v140
    %v142 = vadd.f32 %v127, %v129
    %143 = vadd.xlane.f32.xlu0 %v142
    %v144 = vpop.xlane.xlu0 %143
    %v145 = vadd.f32 %v131, %v133
    %146 = vadd.xlane.f32.xlu0 %v145
    %v147 = vpop.xlane.xlu0 %146
    %v148 = vadd.f32 %v135, %v137
    %149 = vadd.xlane.f32.xlu0 %v148
    %v150 = vpop.xlane.xlu0 %149
    %v151 = vadd.f32 %v139, %v141
    %152 = vadd.xlane.f32.xlu0 %v151
    %v153 = vpop.xlane.xlu0 %152
    %v154 = vrcp.pop %v144
    %v155 = vmul.f32 %v144, %v154
    %v156 = vsub.f32 1.0, %v155
    %v157 = vmul.f32 %v154, %v156
    %v158 = vadd.f32 %v154, %v157
    %vm159 = vweird.f32 %v144
    %vm160 = vweird.f32 %v154
    %vm161 = vmor %vm159, %vm160
    %v162 = vsel %vm161, %v154, %v158
    %v163 = vand.u32 2147483647, %v144
    %vm164 = vcmp.eq.f32.partialorder %v163, 8.507059e+37
    %v165 = vand.u32 %v144, 2147483648
    %v166 = vor.u32 1.1754944e-38, %v165
    %v167 = vsel %vm164, %v166, %v162
    %v168 = vmul.f32 1.0, %v167
    %v169 = vrcp.pop %v147
    %v170 = vmul.f32 %v147, %v169
    %v171 = vsub.f32 1.0, %v170
    %v172 = vmul.f32 %v169, %v171
    %v173 = vadd.f32 %v169, %v172
    %vm174 = vweird.f32 %v147
    %vm175 = vweird.f32 %v169
    %vm176 = vmor %vm174, %vm175
    %v177 = vsel %vm176, %v169, %v173
    %v178 = vand.u32 2147483647, %v147
    %vm179 = vcmp.eq.f32.partialorder %v178, 8.507059e+37
    %v180 = vand.u32 %v147, 2147483648
    %v181 = vor.u32 1.1754944e-38, %v180
    %v182 = vsel %vm179, %v181, %v177
    %v183 = vmul.f32 1.0, %v182
    %v184 = vrcp.pop %v150
    %v185 = vmul.f32 %v150, %v184
    %v186 = vsub.f32 1.0, %v185
    %v187 = vmul.f32 %v184, %v186
    %v188 = vadd.f32 %v184, %v187
    %vm189 = vweird.f32 %v150
    %vm190 = vweird.f32 %v184
    %vm191 = vmor %vm189, %vm190
    %v192 = vsel %vm191, %v184, %v188
    %v193 = vand.u32 2147483647, %v150
    %vm194 = vcmp.eq.f32.partialorder %v193, 8.507059e+37
    %v195 = vand.u32 %v150, 2147483648
    %v196 = vor.u32 1.1754944e-38, %v195
    %v197 = vsel %vm194, %v196, %v192
    %v198 = vmul.f32 1.0, %v197
    %v199 = vrcp.pop %v153
    %v200 = vmul.f32 %v153, %v199
    %v201 = vsub.f32 1.0, %v200
    %v202 = vmul.f32 %v199, %v201
    %v203 = vadd.f32 %v199, %v202
    %vm204 = vweird.f32 %v153
    %vm205 = vweird.f32 %v199
    %vm206 = vmor %vm204, %vm205
    %v207 = vsel %vm206, %v199, %v203
    %v208 = vand.u32 2147483647, %v153
    %vm209 = vcmp.eq.f32.partialorder %v208, 8.507059e+37
    %v210 = vand.u32 %v153, 2147483648
    %v211 = vor.u32 1.1754944e-38, %v210
    %v212 = vsel %vm209, %v211, %v207
    %v213 = vmul.f32 1.0, %v212
    %v214 = vmul.f32 %v127, %v168
    %v215 = vmul.f32 %v129, %v168
    %v216 = vmul.f32 %v131, %v183
    %v217 = vmul.f32 %v133, %v183
    %v218 = vmul.f32 %v135, %v198
    %v219 = vmul.f32 %v137, %v198
    %v220 = vmul.f32 %v139, %v213
    %v221 = vmul.f32 %v141, %v213
    %v222 = vadd.f32 %v214, %v218
    %v223 = vadd.f32 %v215, %v219
    %v224 = vadd.f32 %v216, %v220
    %v225 = vadd.f32 %v217, %v221
    %v226 = vadd.f32 %v214, %v215
    %227 = vadd.xlane.f32.xlu0 %v226
    %v228 = vpop.xlane.xlu0 %227
    %v229 = vadd.f32 %v216, %v217
    %230 = vadd.xlane.f32.xlu0 %v229
    %v231 = vpop.xlane.xlu0 %230
    %v232 = vadd.f32 %v218, %v219
    %233 = vadd.xlane.f32.xlu0 %v232
    %v234 = vpop.xlane.xlu0 %233
    %v235 = vadd.f32 %v220, %v221
    %236 = vadd.xlane.f32.xlu0 %v235
    %v237 = vpop.xlane.xlu0 %236
    %v238 = vadd.f32 %v228, %v234
    %v239 = vadd.f32 %v231, %v237
    %v240 = vadd.f32 %v76, %v78
    %v241 = vadd.f32 %v240, %v80
    %v242 = vadd.f32 %v241, %v82
    %v243 = vrot.slane %v242, 4
    %v244 = vadd.f32 %v242, %v243
    %v245 = vrot.slane %v244, 2
    %v246 = vadd.f32 %v244, %v245
    %v247 = vrot.slane %v246, 1
    %v248 = vadd.f32 %v246, %v247
    %v249 = vadd.f32 %v77, %v79
    %v250 = vadd.f32 %v249, %v81
    %v251 = vadd.f32 %v250, %v83
    %v252 = vrot.slane %v251, 4
    %v253 = vadd.f32 %v251, %v252
    %v254 = vrot.slane %v253, 2
    %v255 = vadd.f32 %v253, %v254
    %v256 = vrot.slane %v255, 1
    %v257 = vadd.f32 %v255, %v256
    %v258 = vmul.f32 %v248, 0.03125
    %v259 = vmul.f32 %v257, 0.03125
    %v260 = vmul.f32 %v71, 0.9
    %v261 = vmul.f32 %v258, 0.1
    %v262 = vmul.f32 %v259, 0.1
    %v265 = vrot.slane %v262, 7
    %vm266 = vcmask 1040384
    %v267 = vsel %vm266, %v261, %v265
    %v269 = vadd.f32 %v260, %v267
    %v270 = vlaneseq
    %vm271 = vcmp.ge.s32.totalorder %v270, 0
    %vm272 = vcmp.lt.s32.totalorder %v270, 256
    %vm273 = vmand %vm271, %vm272
    %274 = vst.msk [vmem:[#allocation9] sm:$0x3] %vm273, %v269
    %v275 = vld [vmem:[#allocation3] sm:$0xff]
    %v276 = vld [vmem:[#allocation3 + $0x8] sm:$0xff]
    %v277 = vunpack.c.l.bf16 %v275
    %v278 = vunpack.c.h.bf16 %v275
    %v279 = vunpack.c.l.bf16 %v276
    %v280 = vunpack.c.h.bf16 %v276
    %v281 = vmul.f32 %v277, 10.0
    %v282 = vmul.f32 %v278, 10.0
    %v283 = vmul.f32 %v279, 10.0
    %v284 = vmul.f32 %v280, 10.0
    %v285 = vmax.f32 %v281, %v282
    %286 = vmax.xlane.f32.xlu0 %v285
    %v287 = vpop.xlane.xlu0 %286
    %v288 = vmax.f32 %v283, %v284
    %289 = vmax.xlane.f32.xlu0 %v288
    %v290 = vpop.xlane.xlu0 %289
    %v291 = vsub.f32 %v281, %v287
    %v292 = vsub.f32 %v282, %v287
    %v293 = vsub.f32 %v283, %v290
    %v294 = vsub.f32 %v284, %v290
    %v295 = vmul.f32 %v291, 1.442695
    %v296 = vpow.pop %v295
    %v297 = vmul.f32 %v292, 1.442695
    %v298 = vpow.pop %v297
    %v299 = vmul.f32 %v293, 1.442695
    %v300 = vpow.pop %v299
    %v301 = vmul.f32 %v294, 1.442695
    %v302 = vpow.pop %v301
    %v303 = vadd.f32 %v296, %v298
    %304 = vadd.xlane.f32.xlu0 %v303
    %v305 = vpop.xlane.xlu0 %304
    %v306 = vadd.f32 %v300, %v302
    %307 = vadd.xlane.f32.xlu0 %v306
    %v308 = vpop.xlane.xlu0 %307
    %v309 = vlog2.pop %v305
    %v310 = vmul.f32 %v309, 0.6931472
    %v311 = vlog2.pop %v308
    %v312 = vmul.f32 %v311, 0.6931472
    %v313 = vmul.f32 %v218, %v291
    %v314 = vmul.f32 %v219, %v292
    %v315 = vmul.f32 %v220, %v293
    %v316 = vmul.f32 %v221, %v294
    %v317 = vadd.f32 %v313, %v314
    %v318 = vadd.f32 %v317, %v315
    %v319 = vadd.f32 %v318, %v316
    %320 = vadd.xlane.f32.xlu0 %v319
    %v321 = vpop.xlane.xlu0 %320
    %v322 = vrot.slane %v321, 4
    %v323 = vadd.f32 %v321, %v322
    %v324 = vrot.slane %v323, 2
    %v325 = vadd.f32 %v323, %v324
    %v326 = vrot.slane %v325, 1
    %v327 = vadd.f32 %v325, %v326
    %s328 = vtos %v327
    %v329 = vstv %s328
    %v330 = vmul.f32 %v234, %v310
    %v331 = vmul.f32 %v237, %v312
    %vm332 = vcmask 7168
    %v333 = vsel %vm332, %v330, 0.0
    %v334 = vsel %vm332, %v331, 0.0
    %v335 = vadd.f32 %v333, %v334
    %336 = vadd.xlane.f32.xlu0 %v335
    %v337 = vpop.xlane.xlu0 %336
    %v338 = vrot.slane %v337, 4
    %v339 = vadd.f32 %v337, %v338
    %v340 = vrot.slane %v339, 2
    %v341 = vadd.f32 %v339, %v340
    %v342 = vrot.slane %v341, 1
    %v343 = vadd.f32 %v341, %v342
    %s344 = vtos %v343
    %v345 = vstv %s344
    %v346 = vsub.f32 %v329, %v345
    %v347 = vadd.f32 %v346, 0.0
    %v348 = vld [vmem:[#allocation3 + $0x10] sm:$0xff]
    %v349 = vld [vmem:[#allocation3 + $0x18] sm:$0xff]
    %v350 = vunpack.c.l.bf16 %v348
    %v351 = vunpack.c.h.bf16 %v348
    %v352 = vunpack.c.l.bf16 %v349
    %v353 = vunpack.c.h.bf16 %v349
    %v354 = vmul.f32 %v350, 10.0
    %v355 = vmul.f32 %v351, 10.0
    %v356 = vmul.f32 %v352, 10.0
    %v357 = vmul.f32 %v353, 10.0
    %v358 = vmax.f32 %v354, %v355
    %359 = vmax.xlane.f32.xlu0 %v358
    %v360 = vpop.xlane.xlu0 %359
    %v361 = vmax.f32 %v356, %v357
    %362 = vmax.xlane.f32.xlu0 %v361
    %v363 = vpop.xlane.xlu0 %362
    %v364 = vsub.f32 %v354, %v360
    %v365 = vsub.f32 %v355, %v360
    %v366 = vsub.f32 %v356, %v363
    %v367 = vsub.f32 %v357, %v363
    %v368 = vmul.f32 %v364, 1.442695
    %v369 = vpow.pop %v368
    %v370 = vmul.f32 %v365, 1.442695
    %v371 = vpow.pop %v370
    %v372 = vmul.f32 %v366, 1.442695
    %v373 = vpow.pop %v372
    %v374 = vmul.f32 %v367, 1.442695
    %v375 = vpow.pop %v374
    %v376 = vadd.f32 %v369, %v371
    %377 = vadd.xlane.f32.xlu0 %v376
    %v378 = vpop.xlane.xlu0 %377
    %v379 = vadd.f32 %v373, %v375
    %380 = vadd.xlane.f32.xlu0 %v379
    %v381 = vpop.xlane.xlu0 %380
    %v382 = vlog2.pop %v378
    %v383 = vmul.f32 %v382, 0.6931472
    %v384 = vlog2.pop %v381
    %v385 = vmul.f32 %v384, 0.6931472
    %v386 = vmul.f32 %v214, %v364
    %v387 = vmul.f32 %v215, %v365
    %v388 = vmul.f32 %v216, %v366
    %v389 = vmul.f32 %v217, %v367
    %v390 = vadd.f32 %v386, %v387
    %v391 = vadd.f32 %v390, %v388
    %v392 = vadd.f32 %v391, %v389
    %393 = vadd.xlane.f32.xlu0 %v392
    %v394 = vpop.xlane.xlu0 %393
    %v395 = vrot.slane %v394, 4
    %v396 = vadd.f32 %v394, %v395
    %v397 = vrot.slane %v396, 2
    %v398 = vadd.f32 %v396, %v397
    %v399 = vrot.slane %v398, 1
    %v400 = vadd.f32 %v398, %v399
    %s401 = vtos %v400
    %v402 = vstv %s401
    %v403 = vmul.f32 %v228, %v383
    %v404 = vmul.f32 %v231, %v385
    %v405 = vsel %vm332, %v403, 0.0
    %v406 = vsel %vm332, %v404, 0.0
    %v407 = vadd.f32 %v405, %v406
    %408 = vadd.xlane.f32.xlu0 %v407
    %v409 = vpop.xlane.xlu0 %408
    %v410 = vrot.slane %v409, 4
    %v411 = vadd.f32 %v409, %v410
    %v412 = vrot.slane %v411, 2
    %v413 = vadd.f32 %v411, %v412
    %v414 = vrot.slane %v413, 1
    %v415 = vadd.f32 %v413, %v414
    %s416 = vtos %v415
    %v417 = vstv %s416
    %v418 = vsub.f32 %v402, %v417
    %v419 = vadd.f32 %v347, %v418
    %v420 = vld [vmem:[#allocation3 + $0x20] sm:$0xff]
    %v421 = vld [vmem:[#allocation3 + $0x28] sm:$0xff]
    %v422 = vunpack.c.l.bf16 %v420
    %v423 = vunpack.c.h.bf16 %v420
    %v424 = vunpack.c.l.bf16 %v421
    %v425 = vunpack.c.h.bf16 %v421
    %v426 = vmul.f32 %v422, 10.0
    %v427 = vmul.f32 %v423, 10.0
    %v428 = vmul.f32 %v424, 10.0
    %v429 = vmul.f32 %v425, 10.0
    %v430 = vmax.f32 %v426, %v427
    %431 = vmax.xlane.f32.xlu0 %v430
    %v432 = vpop.xlane.xlu0 %431
    %v433 = vmax.f32 %v428, %v429
    %434 = vmax.xlane.f32.xlu0 %v433
    %v435 = vpop.xlane.xlu0 %434
    %v436 = vsub.f32 %v426, %v432
    %v437 = vsub.f32 %v427, %v432
    %v438 = vsub.f32 %v428, %v435
    %v439 = vsub.f32 %v429, %v435
    %v440 = vmul.f32 %v436, 1.442695
    %v441 = vpow.pop %v440
    %v442 = vmul.f32 %v437, 1.442695
    %v443 = vpow.pop %v442
    %v444 = vmul.f32 %v438, 1.442695
    %v445 = vpow.pop %v444
    %v446 = vmul.f32 %v439, 1.442695
    %v447 = vpow.pop %v446
    %v448 = vadd.f32 %v441, %v443
    %449 = vadd.xlane.f32.xlu0 %v448
    %v450 = vpop.xlane.xlu0 %449
    %v451 = vadd.f32 %v445, %v447
    %452 = vadd.xlane.f32.xlu0 %v451
    %v453 = vpop.xlane.xlu0 %452
    %v454 = vlog2.pop %v450
    %v455 = vmul.f32 %v454, 0.6931472
    %v456 = vlog2.pop %v453
    %v457 = vmul.f32 %v456, 0.6931472
    %v458 = vmul.f32 %v222, %v436
    %v459 = vmul.f32 %v223, %v437
    %v460 = vmul.f32 %v224, %v438
    %v461 = vmul.f32 %v225, %v439
    %v462 = vadd.f32 %v458, %v459
    %v463 = vadd.f32 %v462, %v460
    %v464 = vadd.f32 %v463, %v461
    %465 = vadd.xlane.f32.xlu0 %v464
    %v466 = vpop.xlane.xlu0 %465
    %v467 = vrot.slane %v466, 4
    %v468 = vadd.f32 %v466, %v467
    %v469 = vrot.slane %v468, 2
    %v470 = vadd.f32 %v468, %v469
    %v471 = vrot.slane %v470, 1
    %v472 = vadd.f32 %v470, %v471
    %s473 = vtos %v472
    %v474 = vstv %s473
    %v475 = vmul.f32 %v238, %v455
    %v476 = vmul.f32 %v239, %v457
    %v477 = vsel %vm332, %v475, 0.0
    %v478 = vsel %vm332, %v476, 0.0
    %v479 = vadd.f32 %v477, %v478
    %480 = vadd.xlane.f32.xlu0 %v479
    %v481 = vpop.xlane.xlu0 %480
    %v482 = vrot.slane %v481, 4
    %v483 = vadd.f32 %v481, %v482
    %v484 = vrot.slane %v483, 2
    %v485 = vadd.f32 %v483, %v484
    %v486 = vrot.slane %v485, 1
    %v487 = vadd.f32 %v485, %v486
    %s488 = vtos %v487
    %v489 = vstv %s488
    %v490 = vsub.f32 %v474, %v489
    %v491 = vadd.f32 %v419, %v490
    %v492 = vld [vmem:[#allocation3 + $0x30] sm:$0xff]
    %v493 = vld [vmem:[#allocation3 + $0x38] sm:$0xff]
    %v494 = vunpack.c.l.bf16 %v492
    %v495 = vunpack.c.h.bf16 %v492
    %v496 = vunpack.c.l.bf16 %v493
    %v497 = vunpack.c.h.bf16 %v493
    %v498 = vmul.f32 %v494, 10.0
    %v499 = vmul.f32 %v495, 10.0
    %v500 = vmul.f32 %v496, 10.0
    %v501 = vmul.f32 %v497, 10.0
    %v502 = vmax.f32 %v498, %v499
    %503 = vmax.xlane.f32.xlu0 %v502
    %v504 = vpop.xlane.xlu0 %503
    %v505 = vmax.f32 %v500, %v501
    %506 = vmax.xlane.f32.xlu0 %v505
    %v507 = vpop.xlane.xlu0 %506
    %v508 = vsub.f32 %v498, %v504
    %v509 = vsub.f32 %v499, %v504
    %v510 = vsub.f32 %v500, %v507
    %v511 = vsub.f32 %v501, %v507
    %v512 = vmul.f32 %v508, 1.442695
    %v513 = vpow.pop %v512
    %v514 = vmul.f32 %v509, 1.442695
    %v515 = vpow.pop %v514
    %v516 = vmul.f32 %v510, 1.442695
    %v517 = vpow.pop %v516
    %v518 = vmul.f32 %v511, 1.442695
    %v519 = vpow.pop %v518
    %v520 = vadd.f32 %v513, %v515
    %521 = vadd.xlane.f32.xlu0 %v520
    %v522 = vpop.xlane.xlu0 %521
    %v523 = vadd.f32 %v517, %v519
    %524 = vadd.xlane.f32.xlu0 %v523
    %v525 = vpop.xlane.xlu0 %524
    %v526 = vlog2.pop %v522
    %v527 = vmul.f32 %v526, 0.6931472
    %v528 = vlog2.pop %v525
    %v529 = vmul.f32 %v528, 0.6931472
    %v530 = vmul.f32 %v222, %v508
    %v531 = vmul.f32 %v223, %v509
    %v532 = vmul.f32 %v224, %v510
    %v533 = vmul.f32 %v225, %v511
    %v534 = vadd.f32 %v530, %v531
    %v535 = vadd.f32 %v534, %v532
    %v536 = vadd.f32 %v535, %v533
    %537 = vadd.xlane.f32.xlu0 %v536
    %v538 = vpop.xlane.xlu0 %537
    %v539 = vrot.slane %v538, 4
    %v540 = vadd.f32 %v538, %v539
    %v541 = vrot.slane %v540, 2
    %v542 = vadd.f32 %v540, %v541
    %v543 = vrot.slane %v542, 1
    %v544 = vadd.f32 %v542, %v543
    %s545 = vtos %v544
    %v546 = vstv %s545
    %v547 = vmul.f32 %v238, %v527
    %v548 = vmul.f32 %v239, %v529
    %v549 = vsel %vm332, %v547, 0.0
    %v550 = vsel %vm332, %v548, 0.0
    %v551 = vadd.f32 %v549, %v550
    %552 = vadd.xlane.f32.xlu0 %v551
    %v553 = vpop.xlane.xlu0 %552
    %v554 = vrot.slane %v553, 4
    %v555 = vadd.f32 %v553, %v554
    %v556 = vrot.slane %v555, 2
    %v557 = vadd.f32 %v555, %v556
    %v558 = vrot.slane %v557, 1
    %v559 = vadd.f32 %v557, %v558
    %s560 = vtos %v559
    %v561 = vstv %s560
    %v562 = vsub.f32 %v546, %v561
    %v563 = vadd.f32 %v491, %v562
    %v564 = vmul.f32 %v563, -0.010416667
    %vm565 = vcmask 0
    %566 = vst.msk [vmem:[#allocation8] sm:$0x1] %vm565, %v564
    // Predicated region
    $region26: #{tpu_custom_call.1} parent=1 // pred_check
      _
    $region27: #{tpu_custom_call.1} parent=1 // pred_check_branch
      %568 = sbr.rel (0) target = $region29
    $region28: #{tpu_custom_call.1} parent=1 // pred_region
      %570 = vsyncadd [#allocation5], 0
      %s572 = sshll.u32 [#allocation8], 4
      %s573 = int_to_ptr.vmem [resolvable:$true] %s572
      %s574 = sshll.u32 %s4, 4
      %s575 = int_to_ptr.hbm [resolvable:$true] %s574
      %577 = dma.vmem_to_hbm [thread:$0]  %s573, 16, %s575, [#allocation5]
    $region29: #{tpu_custom_call.1} parent=1 // pred_fallthru
      _
    // Predicated region
    $region30: #{tpu_custom_call.1} parent=1 // pred_check
      _
    $region31: #{tpu_custom_call.1} parent=1 // pred_check_branch
      %579 = sbr.rel (0) target = $region33
    $region32: #{tpu_custom_call.1} parent=1 // pred_region
      %581 = vsyncadd [#allocation10], 0
      %s583 = sshll.u32 [#allocation9], 4
      %s584 = int_to_ptr.vmem [resolvable:$true] %s583
      %s585 = sshll.u32 %s5, 4
      %s586 = int_to_ptr.hbm [resolvable:$true] %s585
      %588 = dma.vmem_to_hbm [thread:$0]  %s584, 32, %s586, [#allocation10]
    $region33: #{tpu_custom_call.1} parent=1 // pred_fallthru
      _
    // Predicated region
    $region34: #{tpu_custom_call.1} parent=1 // pred_check
      _
    $region35: #{tpu_custom_call.1} parent=1 // pred_check_branch
      %590 = sbr.rel (0) target = $region37
    $region36: #{tpu_custom_call.1} parent=1 // pred_region
      %592 = dma.done [#allocation5], 16
    $region37: #{tpu_custom_call.1} parent=1 // pred_fallthru
      _
    // Predicated region
    $region38: #{tpu_custom_call.1} parent=1 // pred_check
      _
    $region39: #{tpu_custom_call.1} parent=1 // pred_check_branch
      %594 = sbr.rel (0) target = $region41
    $region40: #{tpu_custom_call.1} parent=1 // pred_region
      %596 = dma.done [#allocation10], 32
    $region41: #{tpu_custom_call.1} parent=1 // pred_fallthru
      _
    %597 = vsyncpa [#allocation4], 1
    %598 = vsyncpa [#allocation7], 1
    %599 = vsyncpa [#allocation5], 1
    %600 = vsyncpa [#allocation10], 1

</llo_original>
